<compile_context>
chip_gen: v5e
topology: v5e:2x2
jax: 0.10.0
libtpu: 0.0.40
codegen_flags: <defaults>
</compile_context>

<pallas_src>
from typing import List

import jax
import jax.numpy as jnp
from jax.experimental import pallas as pl
from jax.experimental.pallas import tpu as pltpu


_SUB = 2048        # in-kernel pixel sub-chunk: keeps the (HID, sub) f32 hidden
                   # intermediate at ~256 KiB while the DMA tile stays large.
_TILE_CAP = 131072  # max pixels per grid step (multiple of _SUB); ~17 MiB VMEM
                    # with double-buffered in/out blocks -> fits 32 MiB limit.


# ----------------------------------------------------------------------------
# Pallas kernel: fused preprocess (folded into w1/b1) + detection head + sigmoid
# ----------------------------------------------------------------------------
def _det_kernel(x_ref, w1t_ref, b1_ref, w2t_ref, b2_ref, out_ref):
    # x_ref:   (1, C, T)   bf16 pixel tile, channel-major (pixels on lanes)
    # w1t_ref: (HID, C)    f32 first 1x1 conv weights, normalization folded in
    # b1_ref:  (HID, 1)    f32 first conv bias (normalization folded in)
    # w2t_ref: (1, HID)    f32 second 1x1 conv weights
    # b2_ref:  (1,)        f32 second conv bias (SMEM scalar)
    # out_ref: (1, 1, T)   f32 sigmoid probability per pixel (lane-dense)
    T = x_ref.shape[2]
    sub = T if T <= _SUB else _SUB     # T is a multiple of _SUB whenever T > _SUB
    n_sub = T // sub

    # Hoist the (tiny) weights out of the sub-chunk loop.
    w1t = w1t_ref[...]                 # (HID, C)
    b1 = b1_ref[...]                   # (HID, 1)
    w2t = w2t_ref[...]                 # (1, HID)
    b2 = b2_ref[0]

    @pl.loop(0, n_sub)
    def _(i):
        off = pl.multiple_of(i * sub, sub)
        x = x_ref[0, :, pl.ds(off, sub)].astype(jnp.float32)           # (C, sub)

        # 1x1 conv (C -> HID) with normalization folded in, + ReLU (MXU dot)
        h = jnp.dot(w1t, x, preferred_element_type=jnp.float32)        # (HID, sub)
        h = jnp.maximum(h + b1, 0.0)

        # 1x1 conv (HID -> 1) + sigmoid -> probability row (MXU dot + EUP exp)
        logits = jnp.dot(w2t, h, preferred_element_type=jnp.float32)   # (1, sub)
        out_ref[0, :, pl.ds(off, sub)] = jax.nn.sigmoid(logits + b2)


def _round_up(x: int, m: int) -> int:
    return ((x + m - 1) // m) * m


def _detection_forward(x, w1t, b1, w2t, b2, *, tile_hw=None):
    """x: (N, C, HW) bfloat16 (channel-major). Returns (N, 1, HW) f32 probs."""
    N, C, HW = x.shape
    HID = w1t.shape[0]

    if tile_hw is None:
        if HW <= _SUB:
            # Single full-extent block per page (full-dim blocks need no 128
            # divisibility).
            tile_hw = HW
        else:
            # Large lane-dense tiles, multiple of the in-kernel sub-chunk.
            tile_hw = min(_round_up(HW, _SUB), _TILE_CAP)

    # No jnp.pad / output slice: the ragged last block (HW % tile_hw != 0)
    # computes sigmoid on uninitialized tail lanes; this is safe because OOB
    # writes are dropped and nothing propagates across lanes.
    grid = (N, pl.cdiv(HW, tile_hw))

    out = pl.pallas_call(
        _det_kernel,
        out_shape=jax.ShapeDtypeStruct((N, 1, HW), jnp.float32),
        grid_spec=pltpu.PrefetchScalarGridSpec(
            num_scalar_prefetch=0,
            grid=grid,
            in_specs=[
                pl.BlockSpec((1, C, tile_hw), lambda n, t: (n, 0, t)),  # pixels
                pl.BlockSpec((HID, C), lambda n, t: (0, 0)),            # w1 folded
                pl.BlockSpec((HID, 1), lambda n, t: (0, 0)),            # b1 folded
                pl.BlockSpec((1, HID), lambda n, t: (0, 0)),            # w2
                pl.BlockSpec(memory_space=pltpu.MemorySpace.SMEM),      # b2 scalar
            ],
            out_specs=pl.BlockSpec((1, 1, tile_hw), lambda n, t: (n, 0, t)),
        ),
        compiler_params=pltpu.CompilerParams(
            dimension_semantics=("parallel", "parallel"),
            vmem_limit_bytes=32 * 1024 * 1024,
        ),
    )(x, w1t, b1, w2t, b2)
    return out


# ----------------------------------------------------------------------------
# DetectionPredictor wrapper (pure-JAX glue around the Pallas hot path)
# ----------------------------------------------------------------------------
class DetectionPredictor:
    """Localizes text elements: pre_processor + detection model, fused on TPU."""

    def __init__(self, channels=3, hidden=32):
        self.C, self.HID = channels, hidden

        k = jax.random.PRNGKey(0)
        k1, k2, k3 = jax.random.split(k, 3)

        # pre_processor statistics (deterministic constants)
        self.mean = jnp.full((channels,), 0.5, jnp.float32)
        self.std = jnp.full((channels,), 0.25, jnp.float32)

        # detection head weights (1x1 convs), kept in "reference" layout
        self.w1 = (jax.random.normal(k1, (channels, hidden), jnp.float32)
                   * (1.0 / jnp.sqrt(channels)))
        self.b1 = 0.1 * jax.random.normal(k3, (hidden,), jnp.float32)
        self.w2 = (jax.random.normal(k2, (hidden, 1), jnp.float32)
                   * (1.0 / jnp.sqrt(hidden)))
        self.b2 = jnp.array([0.05], jnp.float32)

        # --- fold normalization into the first conv (wrapper-side precompute)
        inv_std = 1.0 / self.std
        w1_folded = self.w1 * inv_std[:, None]                      # (C, HID)
        b1_folded = self.b1 - (self.mean * inv_std) @ self.w1       # (HID,)

        # --- channel-major kernel parameter layouts
        self.w1t_k = jnp.asarray(w1_folded.T)                       # (HID, C)
        self.b1_k = b1_folded.reshape(hidden, 1)                    # (HID, 1)
        self.w2t_k = jnp.asarray(self.w2.T)                         # (1, HID)
        self.b2_k = self.b2.reshape(1)                              # (1,) SMEM

    def __call__(self, pages: List[jnp.ndarray]) -> List[jnp.ndarray]:
        if any(page.ndim != 3 for page in pages):
            raise ValueError(
                "incorrect input shape: all pages are expected to be "
                "multi-channel 2D images.")
        # pre_processor batching: stack CHW pages -> (N, C, H, W).
        batch = jnp.stack(pages, axis=0)
        N, C, H, W = batch.shape

        # NCHW -> (N, C, H*W): contiguous reshape; bf16 DMA into the kernel
        # (half the HBM read traffic), upcast to f32 happens in-kernel.
        x = batch.reshape(N, C, H * W).astype(jnp.bfloat16)

        probs = _detection_forward(
            x, self.w1t_k, self.b1_k, self.w2t_k, self.b2_k)        # (N, 1, H*W)

        prob_maps = probs.reshape(N, 1, H, W)                       # already NCHW
        # flatten batches -> list of per-page preds (prob maps here).
        return [prob_maps[i] for i in range(N)]


# ----------------------------------------------------------------------------
# Pure-JAX reference for correctness check (un-folded parameters, f32 math on
# the same bf16-quantized input the kernel sees)
# ----------------------------------------------------------------------------
def _reference(pages, pred: DetectionPredictor):
    batch = jnp.stack(pages, 0).astype(jnp.bfloat16).astype(jnp.float32)
    x = jnp.transpose(batch, (0, 2, 3, 1))                          # NHWC
    xn = (x - pred.mean) / pred.std
    h = jnp.maximum(
        jnp.matmul(xn, pred.w1, precision=jax.lax.Precision.HIGHEST) + pred.b1,
        0.0)
    logits = jnp.matmul(h, pred.w2, precision=jax.lax.Precision.HIGHEST) + pred.b2
    p = jax.nn.sigmoid(logits)                                      # (N, H, W, 1)
    return jnp.transpose(p, (0, 3, 1, 2))                           # (N, 1, H, W)


if __name__ == "__main__":
    C, HID = 3, 32
    predictor = DetectionPredictor(channels=C, hidden=HID)
    key = jax.random.PRNGKey(0)

    # --- Test 1: small pages, exact tiling (16x16 -> HW=256, one block/page).
    B, H, W = 2, 16, 16
    pages = [
        jax.random.uniform(jax.random.fold_in(key, i), (C, H, W),
                           dtype=jnp.float32)
        for i in range(B)
    ]
    preds = predictor(pages)
    preds = [jax.block_until_ready(p) for p in preds]
    got = jnp.stack(preds, 0)
    ref = _reference(pages, predictor)
    assert got.shape == (B, 1, H, W), got.shape
    max_err = float(jnp.max(jnp.abs(got - ref)))
    # bf16 input quantization is matched in the reference; tolerance loosened
    # for MXU/EUP vs. XLA differences.
    assert max_err < 2e-2, max_err

    # --- Test 2: ragged pixel tiling (20x20 -> HW=400, tile=128 -> last block
    # ragged), exercising the no-pad / no-slice path.
    H2 = W2 = 20
    pages2 = [
        jax.random.uniform(jax.random.fold_in(key, 100 + i), (C, H2, W2),
                           dtype=jnp.float32)
        for i in range(2)
    ]
    batch2 = jnp.stack(pages2, 0)
    x2 = batch2.reshape(2, C, H2 * W2).astype(jnp.bfloat16)
    probs2 = _detection_forward(
        x2, predictor.w1t_k, predictor.b1_k, predictor.w2t_k, predictor.b2_k,
        tile_hw=128)
    probs2 = jax.block_until_ready(probs2)
    assert probs2.shape == (2, 1, H2 * W2), probs2.shape
    ref2 = _reference(pages2, predictor).reshape(2, 1, H2 * W2)
    max_err2 = float(jnp.max(jnp.abs(probs2 - ref2)))
    assert max_err2 < 2e-2, max_err2

    print("KERNEL_OK")
</pallas_src>

<mosaic_0001>
module attributes {stable_mosaic.version = 11 : i64} {
  func.func @_det_kernel(%arg0: i32, %arg1: i32, %arg2: memref<1x3x256xbf16, #tpu.memory_space<vmem>>, %arg3: memref<32x3xf32, #tpu.memory_space<vmem>>, %arg4: memref<32x1xf32, #tpu.memory_space<vmem>>, %arg5: memref<1x32xf32, #tpu.memory_space<vmem>>, %arg6: memref<1xf32, #tpu.memory_space<smem>>, %arg7: memref<1x1x256xf32, #tpu.memory_space<vmem>>) attributes {dimension_semantics = [#tpu.dimension_semantics<parallel>, #tpu.dimension_semantics<parallel>], iteration_bounds = array<i64: 2, 1>, scalar_prefetch = 0 : i64, scratch_operands = 0 : i64, tpu.core_type = #tpu.core_type<tc>, window_params = [{transform_indices = @transform_0, window_bounds = array<i64: 1, 3, 256>}, {pipeline_mode = #tpu.pipeline_mode<synchronous>, transform_indices = @transform_1, window_bounds = array<i64: 32, 3>}, {pipeline_mode = #tpu.pipeline_mode<synchronous>, transform_indices = @transform_2, window_bounds = array<i64: 32, 1>}, {pipeline_mode = #tpu.pipeline_mode<synchronous>, transform_indices = @transform_3, window_bounds = array<i64: 1, 32>}, {transform_indices = @transform_4, window_bounds = array<i64: 1>}, {transform_indices = @transform_5, window_bounds = array<i64: 1, 1, 256>}]} {
    %c0 = arith.constant 0 : index
    %c0_0 = arith.constant 0 : index
    %0 = vector.load %arg3[%c0, %c0_0] : memref<32x3xf32, #tpu.memory_space<vmem>>, vector<32x3xf32>
    %c0_1 = arith.constant 0 : index
    %c0_2 = arith.constant 0 : index
    %1 = vector.load %arg4[%c0_1, %c0_2] : memref<32x1xf32, #tpu.memory_space<vmem>>, vector<32x1xf32>
    %c0_3 = arith.constant 0 : index
    %c0_4 = arith.constant 0 : index
    %2 = vector.load %arg5[%c0_3, %c0_4] : memref<1x32xf32, #tpu.memory_space<vmem>>, vector<1x32xf32>
    %c0_5 = arith.constant 0 : index
    %3 = memref.load %arg6[%c0_5] : memref<1xf32, #tpu.memory_space<smem>>
    %c0_i32 = arith.constant 0 : i32
    %c1_i32 = arith.constant 1 : i32
    %4 = arith.muli %c0_i32, %c1_i32 : i32
    %c0_i32_6 = arith.constant 0 : i32
    %5 = arith.addi %c0_i32_6, %4 : i32
    %c256_i32 = arith.constant 256 : i32
    %6 = arith.muli %5, %c256_i32 : i32
    %7 = tpu.assume_multiple %6, 256 : i32
    %c0_7 = arith.constant 0 : index
    %c0_8 = arith.constant 0 : index
    %8 = arith.index_cast %7 : i32 to index
    %9 = vector.load %arg2[%c0_7, %c0_8, %8] : memref<1x3x256xbf16, #tpu.memory_space<vmem>>, vector<1x3x256xbf16>
    %10 = vector.shape_cast %9 : vector<1x3x256xbf16> to vector<3x256xbf16>
    %11 = arith.extf %10 : vector<3x256xbf16> to vector<3x256xf32>
    %cst = arith.constant dense<0.000000e+00> : vector<32x256xf32>
    %12 = tpu.matmul %0, %11, %cst {dimension_numbers = #tpu.dot_dimension_numbers<[1], [0], [0], [1], [0, 0, 1, 1], [], []>} : vector<32x3xf32>, vector<3x256xf32>, vector<32x256xf32> -> vector<32x256xf32>
    %13 = vector.broadcast %1 : vector<32x1xf32> to vector<32x256xf32>
    %14 = arith.addf %12, %13 : vector<32x256xf32>
    %cst_9 = arith.constant 0.000000e+00 : f32
    %15 = vector.broadcast %cst_9 : f32 to vector<32x256xf32>
    %16 = arith.maximumf %14, %15 : vector<32x256xf32>
    %cst_10 = arith.constant dense<0.000000e+00> : vector<1x256xf32>
    %17 = tpu.matmul %2, %16, %cst_10 {dimension_numbers = #tpu.dot_dimension_numbers<[1], [0], [0], [1], [0, 0, 1, 1], [], []>} : vector<1x32xf32>, vector<32x256xf32>, vector<1x256xf32> -> vector<1x256xf32>
    %18 = vector.broadcast %3 : f32 to vector<1x256xf32>
    %19 = arith.addf %17, %18 : vector<1x256xf32>
    %20 = arith.negf %19 : vector<1x256xf32>
    %21 = math.exp %20 : vector<1x256xf32>
    %cst_11 = arith.constant 1.000000e+00 : f32
    %22 = vector.broadcast %cst_11 : f32 to vector<1x256xf32>
    %23 = arith.addf %22, %21 : vector<1x256xf32>
    %24 = arith.divf %22, %23 : vector<1x256xf32>
    %c0_12 = arith.constant 0 : index
    %c0_13 = arith.constant 0 : index
    %25 = arith.index_cast %7 : i32 to index
    %26 = vector.load %arg7[%c0_12, %c0_13, %25] : memref<1x1x256xf32, #tpu.memory_space<vmem>>, vector<1x1x256xf32>
    %27 = vector.shape_cast %26 : vector<1x1x256xf32> to vector<1x256xf32>
    %28 = vector.shape_cast %24 : vector<1x256xf32> to vector<1x1x256xf32>
    tpu.vector_store %arg7[%c0_12, %c0_13, %25], %28 {strides = array<i32>} : memref<1x1x256xf32, #tpu.memory_space<vmem>>, vector<1x1x256xf32>,
    %c1_i32_14 = arith.constant 1 : i32
    return
  }
  func.func @transform_0(%arg0: i32, %arg1: i32) -> (i32, i32, i32) {
    %c0_i32 = arith.constant 0 : i32
    %c0_i32_0 = arith.constant 0 : i32
    return %arg0, %c0_i32, %arg1 : i32, i32, i32
  }
  func.func @transform_1(%arg0: i32, %arg1: i32) -> (i32, i32) {
    %c0_i32 = arith.constant 0 : i32
    %c0_i32_0 = arith.constant 0 : i32
    %c0_i32_1 = arith.constant 0 : i32
    return %c0_i32, %c0_i32_0 : i32, i32
  }
  func.func @transform_2(%arg0: i32, %arg1: i32) -> (i32, i32) {
    %c0_i32 = arith.constant 0 : i32
    %c0_i32_0 = arith.constant 0 : i32
    %c0_i32_1 = arith.constant 0 : i32
    return %c0_i32, %c0_i32_0 : i32, i32
  }
  func.func @transform_3(%arg0: i32, %arg1: i32) -> (i32, i32) {
    %c0_i32 = arith.constant 0 : i32
    %c0_i32_0 = arith.constant 0 : i32
    %c0_i32_1 = arith.constant 0 : i32
    return %c0_i32, %c0_i32_0 : i32, i32
  }
  func.func @transform_4(%arg0: i32, %arg1: i32) -> i32 {
    %c0_i32 = arith.constant 0 : i32
    %c0_i32_0 = arith.constant 0 : i32
    return %c0_i32 : i32
  }
  func.func @transform_5(%arg0: i32, %arg1: i32) -> (i32, i32, i32) {
    %c0_i32 = arith.constant 0 : i32
    %c0_i32_0 = arith.constant 0 : i32
    return %arg0, %c0_i32, %arg1 : i32, i32, i32
  }
}

</mosaic_0001>

<llo_original>
// kernel: tpu_custom_call.1
$region0: #{tpu_custom_call.1}
  #allocation0 [shape = 'u32[]', space=smem, size = 0x4, offset = 0x4, fixed_abs, tag = 'smem constant byte address 0x4 - core index']
  #allocation1 [shape = 'u32[72,128]{1,0:T(1,128)}', space=vmem, size = 0x9000, scoped, tag = 'internal scratch']
  #allocation2 [shape = 'f32[1]{0:T(128)S(6)}', space=smem, size = 0x200, scoped, tag = 'scoped memory for tpu_custom_call.1']
  %s0 = inlined_call_operand.vmem [shape: bf16[2,3,256], index: 0, kind: input, shape index: {}]
  %s1 = inlined_call_operand.vmem [shape: f32[32,3], index: 1, kind: input, shape index: {}]
  %s2 = inlined_call_operand.vmem [shape: f32[32,1], index: 2, kind: input, shape index: {}]
  %s3 = inlined_call_operand.vmem [shape: f32[1,32], index: 3, kind: input, shape index: {}]
  %s4 = inlined_call_operand.<no memory space> [shape: f32[1], index: 4, kind: input, shape index: {}]
  %s5 = inlined_call_operand.hbm [shape: f32[2,1,256], index: 5, kind: output, shape index: {}]
  %s6 = sld [smem:[#allocation0]]
  $region53: #{tpu_custom_call.1} parent=0
    _
  %s8 = ssub.s32 1, %s6
  %s9 = scalar_select 0, %s8, %s6
  %10 = sst [smem:[#allocation2]] %s4
  $region1: #{tpu_custom_call.1} parent=0
    #allocation3 [shape = 'u8[2048]{0}', space=vmem, size = 0x800, scoped, tag = 'output window, operand 0']
    #allocation4 [shape = 's32[2]{0}', space=sflag, size = 0x8, scoped, tag = 'scoped memory for tpu_custom_call.1']
    %11 = vsyncpa [#allocation4], 0
    %s12 = scalar_lea.sflag [#allocation4], 1
    %13 = vsyncpa %s12, 0
    loop: start=0, step=1, limit=4
    $region2: #{tpu_custom_call.1} parent=1 // loop_pre_header
      _
    $region3: #{tpu_custom_call.1} parent=1 // loop_header
      %s15 = sphi 0, %s19
      %p16 = scmp.ge.s32.totalorder %s15, 4
      %s22 = sphi 0, %s34
      %s23 = sphi 0, %s30
      %s24 = sphi 0, %s22
      %s25 = sphi 0, %s23
      %s26 = sphi 0, %s24
      %s27 = sphi 0, %s25
      %s39 = sphi 0, %s41
      %s42 = sphi 0, %s39
      %s43 = sphi 0, %s42
      %s59 = sphi 0, %s43
      %s63 = sphi 0, %s63
      %s65 = sphi 0, %s63
      %s66 = sphi 0, %s65
      %s80 = sphi 0, %s66
      %s84 = sphi 0, %s84
      %s86 = sphi 0, %s84
      %s87 = sphi 0, %s86
      %s101 = sphi 0, %s87
      %s105 = sphi 0, %s105
      %s107 = sphi 0, %s105
      %s108 = sphi 0, %s107
      %s122 = sphi 0, %s108
      %s126 = sphi 0, %s126
      %s128 = sphi 0, %s126
      %s129 = sphi 0, %s128
      %s143 = sphi 0, %s129
      %s151 = sphi 0, %s153
      %s154 = sphi 0, %s151
      %s155 = sphi 0, %s154
      %s171 = sphi 0, %s155
    $region4: #{tpu_custom_call.1} parent=1 // loop_header_branch
      %18 = sbr.rel (%p16) target = $region8
    $region5: #{tpu_custom_call.1} parent=1 // loop_body
      %s20 = ssub.s32 %s15, 1
      %s21 = ssub.s32 %s15, 2
      %s28 = sadd.s32 1, %s23
      %p29 = scmp.ge.s32.totalorder %s28, 1
      %s30 = scalar_select %p29, 0, %s28
      %s31 = sadd.s32 1, %s22
      %s32 = scalar_select %p29, %s31, %s22
      %p33 = scmp.ge.s32.totalorder %s32, 2
      %s34 = scalar_select %p33, 0, %s32
      %s35 = ssub.s32 %s22, %s34
      %s36 = ssub.s32 %s23, %s30
      %s37 = sor.u32 %s35, %s36
      %p38 = scmp.eq.s32.totalorder %s37, 0
      %s40 = sadd.s32 %s39, 1
      %s41 = scalar_select %p38, %s39, %s40
      %p44 = pneg %p38
      %p45 = scmp.eq.s32.totalorder %s15, 1
      %p46 = por %p44, %p45
      %p47 = scmp.ne.s32.totalorder %s39, %s42
      %p48 = scmp.eq.s32.totalorder %s15, 0
      %p49 = por %p47, %p48
      %p50 = scmp.ne.s32.totalorder %s39, %s42
      %p51 = scmp.eq.s32.totalorder %s20, 1
      %p52 = por %p50, %p51
      %p53 = scmp.ne.s32.totalorder %s42, %s43
      %p54 = scmp.eq.s32.totalorder %s20, 0
      %p55 = por %p53, %p54
      %p56 = scmp.ne.s32.totalorder %s42, %s43
      %p57 = scmp.eq.s32.totalorder %s21, 1
      %p58 = por %p56, %p57
      %p60 = scmp.ne.s32.totalorder %s43, %s59
      %p61 = scmp.eq.s32.totalorder %s21, 0
      %p62 = por %p60, %p61
      %s64 = sadd.s32 %s63, 1
      %p67 = scmp.eq.s32.totalorder %s15, 1
      %p68 = scmp.ne.s32.totalorder %s63, %s65
      %p69 = scmp.eq.s32.totalorder %s15, 0
      %p70 = por %p68, %p69
      %p71 = scmp.ne.s32.totalorder %s63, %s65
      %p72 = scmp.eq.s32.totalorder %s20, 1
      %p73 = por %p71, %p72
      %p74 = scmp.ne.s32.totalorder %s65, %s66
      %p75 = scmp.eq.s32.totalorder %s20, 0
      %p76 = por %p74, %p75
      %p77 = scmp.ne.s32.totalorder %s65, %s66
      %p78 = scmp.eq.s32.totalorder %s21, 1
      %p79 = por %p77, %p78
      %p81 = scmp.ne.s32.totalorder %s66, %s80
      %p82 = scmp.eq.s32.totalorder %s21, 0
      %p83 = por %p81, %p82
      %s85 = sadd.s32 %s84, 1
      %p88 = scmp.eq.s32.totalorder %s15, 1
      %p89 = scmp.ne.s32.totalorder %s84, %s86
      %p90 = scmp.eq.s32.totalorder %s15, 0
      %p91 = por %p89, %p90
      %p92 = scmp.ne.s32.totalorder %s84, %s86
      %p93 = scmp.eq.s32.totalorder %s20, 1
      %p94 = por %p92, %p93
      %p95 = scmp.ne.s32.totalorder %s86, %s87
      %p96 = scmp.eq.s32.totalorder %s20, 0
      %p97 = por %p95, %p96
      %p98 = scmp.ne.s32.totalorder %s86, %s87
      %p99 = scmp.eq.s32.totalorder %s21, 1
      %p100 = por %p98, %p99
      %p102 = scmp.ne.s32.totalorder %s87, %s101
      %p103 = scmp.eq.s32.totalorder %s21, 0
      %p104 = por %p102, %p103
      %s106 = sadd.s32 %s105, 1
      %p109 = scmp.eq.s32.totalorder %s15, 1
      %p110 = scmp.ne.s32.totalorder %s105, %s107
      %p111 = scmp.eq.s32.totalorder %s15, 0
      %p112 = por %p110, %p111
      %p113 = scmp.ne.s32.totalorder %s105, %s107
      %p114 = scmp.eq.s32.totalorder %s20, 1
      %p115 = por %p113, %p114
      %p116 = scmp.ne.s32.totalorder %s107, %s108
      %p117 = scmp.eq.s32.totalorder %s20, 0
      %p118 = por %p116, %p117
      %p119 = scmp.ne.s32.totalorder %s107, %s108
      %p120 = scmp.eq.s32.totalorder %s21, 1
      %p121 = por %p119, %p120
      %p123 = scmp.ne.s32.totalorder %s108, %s122
      %p124 = scmp.eq.s32.totalorder %s21, 0
      %p125 = por %p123, %p124
      %s127 = sadd.s32 %s126, 1
      %p130 = scmp.eq.s32.totalorder %s15, 1
      %p131 = scmp.ne.s32.totalorder %s126, %s128
      %p132 = scmp.eq.s32.totalorder %s15, 0
      %p133 = por %p131, %p132
      %p134 = scmp.ne.s32.totalorder %s126, %s128
      %p135 = scmp.eq.s32.totalorder %s20, 1
      %p136 = por %p134, %p135
      %p137 = scmp.ne.s32.totalorder %s128, %s129
      %p138 = scmp.eq.s32.totalorder %s20, 0
      %p139 = por %p137, %p138
      %p140 = scmp.ne.s32.totalorder %s128, %s129
      %p141 = scmp.eq.s32.totalorder %s21, 1
      %p142 = por %p140, %p141
      %p144 = scmp.ne.s32.totalorder %s129, %s143
      %p145 = scmp.eq.s32.totalorder %s21, 0
      %p146 = por %p144, %p145
      %s147 = ssub.s32 %s22, %s34
      %s148 = ssub.s32 %s23, %s30
      %s149 = sor.u32 %s147, %s148
      %p150 = scmp.eq.s32.totalorder %s149, 0
      %s152 = sadd.s32 %s151, 1
      %s153 = scalar_select %p150, %s151, %s152
      %p156 = pneg %p150
      %p157 = scmp.eq.s32.totalorder %s15, 1
      %p158 = por %p156, %p157
      %p159 = scmp.ne.s32.totalorder %s151, %s154
      %p160 = scmp.eq.s32.totalorder %s15, 0
      %p161 = por %p159, %p160
      %p162 = scmp.ne.s32.totalorder %s151, %s154
      %p163 = scmp.eq.s32.totalorder %s20, 1
      %p164 = por %p162, %p163
      %p165 = scmp.ne.s32.totalorder %s154, %s155
      %p166 = scmp.eq.s32.totalorder %s20, 0
      %p167 = por %p165, %p166
      %p168 = scmp.ne.s32.totalorder %s154, %s155
      %p169 = scmp.eq.s32.totalorder %s21, 1
      %p170 = por %p168, %p169
      %p172 = scmp.ne.s32.totalorder %s155, %s171
      %p173 = scmp.eq.s32.totalorder %s21, 0
      %p174 = por %p172, %p173
      %p175 = scmp.le.s32.totalorder 1, %s15
      %p176 = scmp.lt.s32.totalorder %s15, 3
      %p177 = pnand %p175, %p176
      %p178 = pneg %p177
      // Predicated region
      $region9: #{tpu_custom_call.1} parent=5 // pred_check
        _
      $region10: #{tpu_custom_call.1} parent=5 // pred_check_branch
        %180 = sbr.rel (%p177) target = $region12
      $region11: #{tpu_custom_call.1} parent=5 // pred_region
        %s181 = ssub.s32 %s15, 1
        // Predicated region
        $region13: #{tpu_custom_call.1} parent=11 // pred_check
          %p182 = pneg %p76
        $region14: #{tpu_custom_call.1} parent=11 // pred_check_branch
          %184 = sbr.rel (%p182) target = $region16
        $region15: #{tpu_custom_call.1} parent=11 // pred_region
          _
        $region16: #{tpu_custom_call.1} parent=11 // pred_fallthru
          _
        // Predicated region
        $region17: #{tpu_custom_call.1} parent=11 // pred_check
          %p185 = pneg %p97
        $region18: #{tpu_custom_call.1} parent=11 // pred_check_branch
          %187 = sbr.rel (%p185) target = $region20
        $region19: #{tpu_custom_call.1} parent=11 // pred_region
          _
        $region20: #{tpu_custom_call.1} parent=11 // pred_fallthru
          _
        // Predicated region
        $region21: #{tpu_custom_call.1} parent=11 // pred_check
          %p188 = pneg %p118
        $region22: #{tpu_custom_call.1} parent=11 // pred_check_branch
          %190 = sbr.rel (%p188) target = $region24
        $region23: #{tpu_custom_call.1} parent=11 // pred_region
          _
        $region24: #{tpu_custom_call.1} parent=11 // pred_fallthru
          _
        // Predicated region
        $region25: #{tpu_custom_call.1} parent=11 // pred_check
          %p191 = pneg %p139
        $region26: #{tpu_custom_call.1} parent=11 // pred_check_branch
          %193 = sbr.rel (%p191) target = $region28
        $region27: #{tpu_custom_call.1} parent=11 // pred_region
          _
        $region28: #{tpu_custom_call.1} parent=11 // pred_fallthru
          _
      $region12: #{tpu_custom_call.1} parent=5 // pred_fallthru
        _
      %p194 = scmp.lt.s32.totalorder %s15, 2
      // Predicated region
      $region29: #{tpu_custom_call.1} parent=5 // pred_check
        %p195 = pneg %p194
      $region30: #{tpu_custom_call.1} parent=5 // pred_check_branch
        %197 = sbr.rel (%p195) target = $region32
      $region31: #{tpu_custom_call.1} parent=5 // pred_region
        // Predicated region
        $region33: #{tpu_custom_call.1} parent=31 // pred_check
          %p198 = pneg %p49
        $region34: #{tpu_custom_call.1} parent=31 // pred_check_branch
          %200 = sbr.rel (%p198) target = $region36
        $region35: #{tpu_custom_call.1} parent=31 // pred_region
          %s201 = smul.u32 2, %s23
          %p202 = scmp.lt.s32.totalorder %s22, 1
          %s203 = scalar_select %p202, %s22, 1
          %p204 = scmp.lt.s32.totalorder %s201, 1
          %s205 = scalar_select %p204, %s201, 1
          %s206 = smul.addr %s203, 2
          %s207 = sadd.s32 %s205, %s206
          %s208 = smul.addr %s207, 2
          %s209 = scalar_lea.vmem %s0, %s208
          %s210 = smul.u32 2, %s23
        $region36: #{tpu_custom_call.1} parent=31 // pred_fallthru
          _
      $region32: #{tpu_custom_call.1} parent=5 // pred_fallthru
        _
      %p211 = scmp.le.s32.totalorder 1, %s15
      %p212 = scmp.lt.s32.totalorder %s15, 3
      %p213 = pnand %p211, %p212
      %p214 = pneg %p213
      // Predicated region
      $region37: #{tpu_custom_call.1} parent=5 // pred_check
        _
      $region38: #{tpu_custom_call.1} parent=5 // pred_check_branch
        %216 = sbr.rel (%p213) target = $region40
      $region39: #{tpu_custom_call.1} parent=5 // pred_region
        %s217 = ssub.s32 %s15, 1
        %s218 = smul.u32 2, %s25
        %p219 = scmp.lt.s32.totalorder %s24, 1
        %s220 = scalar_select %p219, %s24, 1
        %p221 = scmp.lt.s32.totalorder %s218, 1
        %s222 = scalar_select %p221, %s218, 1
        %s223 = smul.addr %s220, 2
        %s224 = sadd.s32 %s222, %s223
        %s225 = smul.addr %s224, 2
        %s226 = scalar_lea.vmem %s0, %s225
        %p227 = pneg %p55
        %p228 = pneg %p52
        %p229 = pneg %p76
        %p230 = pneg %p73
        %p231 = pneg %p97
        %p232 = pneg %p94
        %p233 = pneg %p118
        %p234 = pneg %p115
        %p235 = pneg %p139
        %p236 = pneg %p136
        %p237 = pneg %p167
        %p238 = pneg %p164
        %s239 = sand.u32 %s154, 1
        %s240 = scalar_lea.sflag [#allocation4], %s239
        %s241 = sand.u32 %s154, 1
        %s242 = smul.addr %s241, 2
        %s243 = scalar_lea.vmem [#allocation3], %s242
        %s244 = smul.u32 2, %s25
        %p245 = scmp.lt.s32.totalorder %s24, 1
        %s246 = scalar_select %p245, %s24, 1
        %p247 = scmp.lt.s32.totalorder %s244, 1
        %s248 = scalar_select %p247, %s244, 1
        %s249 = smul.addr %s246, 2
        %s250 = sadd.s32 %s248, %s249
        %s251 = smul.addr %s250, 2
        %s252 = scalar_lea.vmem %s0, %s251
        %s253 = smul.u32 2, %s25
        %s254 = smul.u32 2, %s25
        %v255 = vld [vmem:[%s1] sm:$0xff]
        %v256 = vld [vmem:[%s1 + $0x8] sm:$0xff]
        %v257 = vld [vmem:[%s1 + $0x10] sm:$0xff]
        %v258 = vld [vmem:[%s1 + $0x18] sm:$0xff]
        %v259 = vld [vmem:[%s2] sm:$0xff]
        %v260 = vld [vmem:[%s2 + $0x8] sm:$0xff]
        %v261 = vld [vmem:[%s2 + $0x10] sm:$0xff]
        %v262 = vld [vmem:[%s2 + $0x18] sm:$0xff]
        %v263 = vld [vmem:[%s3] sm:$0x1]
        %s264 = sld [smem:[#allocation2]]
        %v265 = vld [vmem:[%s252] sm:$0xf]
        %v266 = vunpack.c.l.bf16 %v265
        %268 = vset.pattern.permute.xlu0 0
        %269 = vperm.xlu0 %268, %v259
        %v270 = vpop.permute.xlu0 %269
        %273 = vset.pattern.permute.xlu0 0
        %274 = vperm.xlu0 %273, %v260
        %v275 = vpop.permute.xlu0 %274
        %278 = vset.pattern.permute.xlu0 0
        %279 = vperm.xlu0 %278, %v261
        %v280 = vpop.permute.xlu0 %279
        %283 = vset.pattern.permute.xlu0 0
        %284 = vperm.xlu0 %283, %v262
        %v285 = vpop.permute.xlu0 %284
        %288 = vst [vmem:[#allocation1] ss:$2 sm:$0xff] %v266
        %v289 = vld.sshfl [vmem:[#allocation1] sm:$0xff pattern:$0x75316420]
        %v290 = vld.sshfl [vmem:[#allocation1 + $0x8] sm:$0xff pattern:$0x75316420]
        %vm291 = vcmask 23552
        %v293 = vsel %vm291, %v255, 0
        %v296 = vsel %vm291, %v256, 0
        %v299 = vsel %vm291, %v257, 0
        %v302 = vsel %vm291, %v258, 0
        %vm304 = vcmask 1042432
        %v305 = vsel %vm304, %v289, 0
        %v307 = vsel %vm304, %v290, 0
        %309 = vmatpush.msra.mxu0 0.0
        %310 = vmatpush.msra.mxu0 0.0
        %311 = vmatpush.msra.mxu0 0.0
        %312 = vmatpush.msra.mxu0 0.0
        %313 = vmatpush.msra.mxu0 0.0
        %314 = vmatpush.msra.mxu0 0.0
        %315 = vmatpush.msra.mxu0 0.0
        %316 = vmatpush.msra.mxu0 0.0
        %317 = vmatpush.msra.mxu0 0.0
        %318 = vmatpush.msra.mxu0 0.0
        %319 = vmatpush.msra.mxu0 0.0
        %320 = vmatpush.msra.mxu0 0.0
        %321 = vmatpush.msra.mxu0 0.0
        %322 = vmatpush.msra.mxu0 0.0
        %323 = vmatpush.msra.mxu0 0.0
        %324 = vmatpush.msra.mxu0 %v305
        %325 = vmatmul.f32.gmra.mxu0 %v293
        %v326 = vpop.f32.mrf.mxu0
        %v327 = vadd.f32 %v270, %v326
        %328 = vmatmul.f32.gmra.mxu0 %v296
        %v329 = vpop.f32.mrf.mxu0
        %v330 = vadd.f32 %v275, %v329
        %331 = vmatmul.f32.gmra.mxu0 %v299
        %v332 = vpop.f32.mrf.mxu0
        %v333 = vadd.f32 %v280, %v332
        %334 = vmatmul.f32.gmra.mxu0 %v302
        %v335 = vpop.f32.mrf.mxu0
        %v336 = vadd.f32 %v285, %v335
        %337 = vdwg.mxu0
        %338 = vmatpush.msra.mxu0 0.0
        %339 = vmatpush.msra.mxu0 0.0
        %340 = vmatpush.msra.mxu0 0.0
        %341 = vmatpush.msra.mxu0 0.0
        %342 = vmatpush.msra.mxu0 0.0
        %343 = vmatpush.msra.mxu0 0.0
        %344 = vmatpush.msra.mxu0 0.0
        %345 = vmatpush.msra.mxu0 0.0
        %346 = vmatpush.msra.mxu0 0.0
        %347 = vmatpush.msra.mxu0 0.0
        %348 = vmatpush.msra.mxu0 0.0
        %349 = vmatpush.msra.mxu0 0.0
        %350 = vmatpush.msra.mxu0 0.0
        %351 = vmatpush.msra.mxu0 0.0
        %352 = vmatpush.msra.mxu0 0.0
        %353 = vmatpush.msra.mxu0 %v307
        %354 = vmatmul.f32.gmra.mxu0 %v293
        %v355 = vpop.f32.mrf.mxu0
        %v356 = vadd.f32 %v270, %v355
        %357 = vmatmul.f32.gmra.mxu0 %v296
        %v358 = vpop.f32.mrf.mxu0
        %v359 = vadd.f32 %v275, %v358
        %360 = vmatmul.f32.gmra.mxu0 %v299
        %v361 = vpop.f32.mrf.mxu0
        %v362 = vadd.f32 %v280, %v361
        %363 = vmatmul.f32.gmra.mxu0 %v302
        %v364 = vpop.f32.mrf.mxu0
        %v365 = vadd.f32 %v285, %v364
        %366 = vdwg.mxu0
        %v367 = vmax.f32 %v327, 0.0
        %v368 = vmax.f32 %v356, 0.0
        %v369 = vmax.f32 %v330, 0.0
        %v370 = vmax.f32 %v359, 0.0
        %v371 = vmax.f32 %v333, 0.0
        %v372 = vmax.f32 %v362, 0.0
        %v373 = vmax.f32 %v336, 0.0
        %v374 = vmax.f32 %v365, 0.0
        %v375 = vstv %s264
        %vm376 = vcmask 261120
        %v378 = vsel %vm376, %v263, 0
        %380 = vmatpush.msra.mxu0 0.0
        %381 = vmatpush.msra.mxu0 0.0
        %382 = vmatpush.msra.mxu0 0.0
        %383 = vmatpush.msra.mxu0 0.0
        %384 = vmatpush.msra.mxu0 0.0
        %385 = vmatpush.msra.mxu0 0.0
        %386 = vmatpush.msra.mxu0 0.0
        %387 = vmatpush.msra.mxu0 0.0
        %388 = vmatpush.msra.mxu0 0.0
        %389 = vmatpush.msra.mxu0 0.0
        %390 = vmatpush.msra.mxu0 0.0
        %391 = vmatpush.msra.mxu0 0.0
        %392 = vmatpush.msra.mxu0 %v373
        %393 = vmatpush.msra.mxu0 %v371
        %394 = vmatpush.msra.mxu0 %v369
        %395 = vmatpush.msra.mxu0 %v367
        %396 = vmatmul.f32.gmra.mxu0 %v378
        %v397 = vpop.f32.mrf.mxu0
        %v398 = vadd.f32 %v375, %v397
        %399 = vdwg.mxu0
        %400 = vmatpush.msra.mxu0 0.0
        %401 = vmatpush.msra.mxu0 0.0
        %402 = vmatpush.msra.mxu0 0.0
        %403 = vmatpush.msra.mxu0 0.0
        %404 = vmatpush.msra.mxu0 0.0
        %405 = vmatpush.msra.mxu0 0.0
        %406 = vmatpush.msra.mxu0 0.0
        %407 = vmatpush.msra.mxu0 0.0
        %408 = vmatpush.msra.mxu0 0.0
        %409 = vmatpush.msra.mxu0 0.0
        %410 = vmatpush.msra.mxu0 0.0
        %411 = vmatpush.msra.mxu0 0.0
        %412 = vmatpush.msra.mxu0 %v374
        %413 = vmatpush.msra.mxu0 %v372
        %414 = vmatpush.msra.mxu0 %v370
        %415 = vmatpush.msra.mxu0 %v368
        %416 = vmatmul.f32.gmra.mxu0 %v378
        %v417 = vpop.f32.mrf.mxu0
        %v418 = vadd.f32 %v375, %v417
        %419 = vdwg.mxu0
        %v420 = vxor.u32 %v398, 2147483648
        %v421 = vxor.u32 %v418, 2147483648
        %v422 = vmul.f32 %v420, 1.442695
        %v423 = vpow.pop %v422
        %v424 = vmul.f32 %v421, 1.442695
        %v425 = vpow.pop %v424
        %v426 = vadd.f32 %v423, 1.0
        %v427 = vadd.f32 %v425, 1.0
        %v428 = vrcp.pop %v426
        %v429 = vmul.f32 %v426, %v428
        %v430 = vsub.f32 1.0, %v429
        %v431 = vmul.f32 %v428, %v430
        %v432 = vadd.f32 %v428, %v431
        %vm433 = vweird.f32 %v426
        %vm434 = vweird.f32 %v428
        %vm435 = vmor %vm433, %vm434
        %v436 = vsel %vm435, %v428, %v432
        %v437 = vand.u32 2147483647, %v426
        %vm438 = vcmp.eq.f32.partialorder %v437, 8.507059e+37
        %v439 = vand.u32 %v426, 2147483648
        %v440 = vor.u32 1.1754944e-38, %v439
        %v441 = vsel %vm438, %v440, %v436
        %v442 = vmul.f32 1.0, %v441
        %v443 = vrcp.pop %v427
        %v444 = vmul.f32 %v427, %v443
        %v445 = vsub.f32 1.0, %v444
        %v446 = vmul.f32 %v443, %v445
        %v447 = vadd.f32 %v443, %v446
        %vm448 = vweird.f32 %v427
        %vm449 = vweird.f32 %v443
        %vm450 = vmor %vm448, %vm449
        %v451 = vsel %vm450, %v443, %v447
        %v452 = vand.u32 2147483647, %v427
        %vm453 = vcmp.eq.f32.partialorder %v452, 8.507059e+37
        %v454 = vand.u32 %v427, 2147483648
        %v455 = vor.u32 1.1754944e-38, %v454
        %v456 = vsel %vm453, %v455, %v451
        %v457 = vmul.f32 1.0, %v456
        %v460 = vrot.slane %v457, 7
        %vm461 = vcmask 1040384
        %v462 = vsel %vm461, %v442, %v460
        %v464 = vlaneseq
        %vm465 = vcmp.ge.s32.totalorder %v464, 0
        %vm466 = vcmp.lt.s32.totalorder %v464, 256
        %vm467 = vmand %vm465, %vm466
        %468 = vst.msk [vmem:[%s243] sm:$0x3] %vm467, %v462
        %s469 = sand.u32 %s154, 1
        %s470 = scalar_lea.sflag [#allocation4], %s469
        %s471 = sand.u32 %s154, 1
        %s472 = smul.addr %s471, 2
        %s473 = scalar_lea.vmem [#allocation3], %s472
        // Predicated region
        $region41: #{tpu_custom_call.1} parent=39 // pred_check
          %p474 = pneg %p164
        $region42: #{tpu_custom_call.1} parent=39 // pred_check_branch
          %476 = sbr.rel (%p474) target = $region44
        $region43: #{tpu_custom_call.1} parent=39 // pred_region
          %s477 = smul.u32 2, %s25
          %479 = vsyncadd %s470, 0
          %s480 = smul.addr %s24, 2
          %s481 = sadd.s32 %s477, %s480
          %s482 = scalar_lea.hbm %s5, %s481
          %s484 = sshll.u32 %s473, 4
          %s485 = int_to_ptr.vmem [resolvable:$true] %s484
          %s486 = sshll.u32 %s482, 4
          %s487 = int_to_ptr.hbm [resolvable:$true] %s486
          %489 = dma.vmem_to_hbm [thread:$0]  %s485, 32, %s487, %s470
        $region44: #{tpu_custom_call.1} parent=39 // pred_fallthru
          _
      $region40: #{tpu_custom_call.1} parent=5 // pred_fallthru
        _
      %p490 = scmp.le.s32.totalorder 2, %s15
      // Predicated region
      $region45: #{tpu_custom_call.1} parent=5 // pred_check
        %p491 = pneg %p490
      $region46: #{tpu_custom_call.1} parent=5 // pred_check_branch
        %493 = sbr.rel (%p491) target = $region48
      $region47: #{tpu_custom_call.1} parent=5 // pred_region
        %s494 = ssub.s32 %s15, 2
        // Predicated region
        $region49: #{tpu_custom_call.1} parent=47 // pred_check
          %p495 = pneg %p170
        $region50: #{tpu_custom_call.1} parent=47 // pred_check_branch
          %497 = sbr.rel (%p495) target = $region52
        $region51: #{tpu_custom_call.1} parent=47 // pred_region
          %s498 = sand.u32 %s155, 1
          %s499 = scalar_lea.sflag [#allocation4], %s498
          %s500 = sand.u32 %s155, 1
          %s501 = smul.addr %s500, 2
          %s502 = scalar_lea.vmem [#allocation3], %s501
          %504 = dma.done %s499, 32
        $region52: #{tpu_custom_call.1} parent=47 // pred_fallthru
          _
      $region48: #{tpu_custom_call.1} parent=5 // pred_fallthru
        _
    $region6: #{tpu_custom_call.1} parent=1 // loop_footer
      %s19 = sadd.s32 1, %s15
    $region7: #{tpu_custom_call.1} parent=1 // loop_footer_branch
      %14 = sbr.rel target = $region3
    $region8: #{tpu_custom_call.1} parent=1 // loop_exit
      _
    %505 = vsyncpa [#allocation4], 1
    %s506 = scalar_lea.sflag [#allocation4], 1
    %507 = vsyncpa %s506, 1

</llo_original>
